<compile_context>
chip_gen: v6e
topology: v6e:2x2x1
jax: 0.10.0
libtpu: 0.0.40
codegen_flags: <defaults>
</compile_context>

<pallas_src>
import functools

import jax
import jax.numpy as jnp
from jax import lax
from jax.experimental import pallas as pl
from jax.experimental.pallas import tpu as pltpu


def _round_up(x, m):
    return ((x + m - 1) // m) * m


_VMEM = pl.BlockSpec(memory_space=pltpu.MemorySpace.VMEM)


# ----------------------------- Fused Pallas kernel --------------------------


def _decoder_step_kernel(*refs, num_layers, hp, out_dim):
    """Fully fused decoder step: all LSTM layers + tanh + both heads.

    refs layout:
      [x, h0, c0, W_0..W_{L-1}, b_0..b_{L-1}, W_head, b_head,   (inputs)
       h_out, c_out, head_out]                                  (outputs)

    All feature dims are pre-padded to multiples of 128 lanes; each gate owns a
    128-aligned lane block, so every slice below is a whole-vreg slice and
    every store is lane-dense.
    """
    x_ref, h0_ref, c0_ref = refs[0], refs[1], refs[2]
    w_refs = refs[3:3 + num_layers]
    b_refs = refs[3 + num_layers:3 + 2 * num_layers]
    whead_ref = refs[3 + 2 * num_layers]
    bhead_ref = refs[4 + 2 * num_layers]
    h_out_ref, c_out_ref, head_out_ref = refs[5 + 2 * num_layers:]

    x = x_ref[...]
    for layer in range(num_layers):
        h_prev = h0_ref[layer]
        c_prev = c0_ref[layer]
        # Single fused gate matmul on [x | h_prev]; weights already stacked as
        # [x-rows ; h-rows] (zero rows under the padding lanes).
        xh = jnp.concatenate([x, h_prev], axis=1)
        gates = (jnp.dot(xh, w_refs[layer][...],
                         preferred_element_type=jnp.float32)
                 + b_refs[layer][...])                          # [B, 4*hp]

        i_g = jax.nn.sigmoid(gates[:, 0 * hp:1 * hp])
        f_g = jax.nn.sigmoid(gates[:, 1 * hp:2 * hp])
        g_g = jnp.tanh(gates[:, 2 * hp:3 * hp])
        o_g = jax.nn.sigmoid(gates[:, 3 * hp:4 * hp])

        c_new = f_g * c_prev + i_g * g_g
        h_new = o_g * jnp.tanh(c_new)

        h_out_ref[layer] = h_new
        c_out_ref[layer] = c_new
        x = h_new                                               # feeds next layer

    # Merged heads: one matmul over [W_lin | W_cat_0 | ... ] (lane-padded),
    # relu only on the first out_dim lanes via an iota mask.
    dec = jnp.tanh(x)
    y = (jnp.dot(dec, whead_ref[...], preferred_element_type=jnp.float32)
         + bhead_ref[...])
    col = lax.broadcasted_iota(jnp.int32, y.shape, 1)
    head_out_ref[...] = jnp.where(col < out_dim, jnp.maximum(y, 0.0), y)


# ----------------------------- Module equivalent ----------------------------


class LSTMAttentionEmbeddingDecoder:
    """JAX/Pallas equivalent of LSTM_attention_embedding_decoder."""

    def __init__(self, input_dim, hidden_size, output_dim, num_classes,
                 num_layers=1, key=jax.random.PRNGKey(0)):
        self.input_dim = input_dim
        self.hidden_size = hidden_size
        self.output_dim = output_dim
        self.num_classes = tuple(num_classes)
        self.num_layers = num_layers

        H = hidden_size
        self._hp = _round_up(H, 128)                       # padded hidden (per gate)
        self._dp = _round_up(input_dim, 128)               # padded layer-0 input
        self._cat_dim = sum(self.num_classes)
        self._p_head = _round_up(output_dim + self._cat_dim, 128)

        k = 1.0 / jnp.sqrt(hidden_size)
        keys = jax.random.split(key, 4 * num_layers + 2 + 2 * len(self.num_classes))
        ki = iter(keys)

        def u(kk, shape):
            return jax.random.uniform(kk, shape, jnp.float32, -k, k)

        HP, DP = self._hp, self._dp

        # Raw PyTorch-layout parameters (kept for the pure-JAX reference).
        self.w_ih, self.w_hh, self.b_ih, self.b_hh = [], [], [], []
        # Fused / lane-padded kernel parameters.
        # TODO(synk): for production H, cast these to bf16 on v6e/v7x (keep f32
        # accumulation); kept f32 here to match the f32 reference exactly.
        self._w_packed, self._b_packed = [], []

        for layer in range(num_layers):
            d_in = input_dim if layer == 0 else H
            d_in_pad = DP if layer == 0 else HP
            w_ih = u(next(ki), (4 * H, d_in))
            w_hh = u(next(ki), (4 * H, H))
            b_ih = u(next(ki), (4 * H,))
            b_hh = u(next(ki), (4 * H,))
            self.w_ih.append(w_ih)
            self.w_hh.append(w_hh)
            self.b_ih.append(b_ih)
            self.b_hh.append(b_hh)

            # Stacked [x-rows ; h-rows] weight with each gate in its own
            # 128-aligned lane block; padding rows/lanes are zero.
            W = jnp.zeros((d_in_pad + HP, 4 * HP), jnp.float32)
            b = jnp.zeros((1, 4 * HP), jnp.float32)
            for g in range(4):
                W = W.at[:d_in, g * HP:g * HP + H].set(w_ih[g * H:(g + 1) * H, :].T)
                W = W.at[d_in_pad:d_in_pad + H, g * HP:g * HP + H].set(
                    w_hh[g * H:(g + 1) * H, :].T)
                b = b.at[0, g * HP:g * HP + H].set(
                    b_ih[g * H:(g + 1) * H] + b_hh[g * H:(g + 1) * H])
            self._w_packed.append(W)
            self._b_packed.append(b)

        # Heads (continuous + categorical) merged into one padded matmul.
        w_lin = u(next(ki), (output_dim, H))
        b_lin = u(next(ki), (output_dim,))
        self.w_lin, self.b_lin = w_lin, b_lin
        self.w_cat, self.b_cat = [], []
        for nc in self.num_classes:
            self.w_cat.append(u(next(ki), (nc, H)))
            self.b_cat.append(u(next(ki), (nc,)))

        W_head = jnp.zeros((HP, self._p_head), jnp.float32)
        b_head = jnp.zeros((1, self._p_head), jnp.float32)
        W_head = W_head.at[:H, :output_dim].set(w_lin.T)
        b_head = b_head.at[0, :output_dim].set(b_lin)
        off = output_dim
        for w_c, b_c in zip(self.w_cat, self.b_cat):
            nc = w_c.shape[0]
            W_head = W_head.at[:H, off:off + nc].set(w_c.T)
            b_head = b_head.at[0, off:off + nc].set(b_c)
            off += nc
        self._w_head = W_head
        self._b_head = b_head

    # ------------------------------ forward --------------------------------

    def __call__(self, inp, hidden):
        B = inp.shape[0]
        L, H, HP, DP = self.num_layers, self.hidden_size, self._hp, self._dp

        x = inp.reshape(B, -1).astype(jnp.float32)   # == inp.view(B, 1, -1), seq_len 1
        h0, c0 = hidden

        # Zero-pad features to 128-lane multiples (padding lanes stay exactly 0
        # through the kernel, so the output slices below are exact).
        x_pad = jnp.zeros((B, DP), jnp.float32).at[:, :self.input_dim].set(x)
        h0_pad = jnp.zeros((L, B, HP), jnp.float32).at[:, :, :H].set(
            h0.astype(jnp.float32))
        c0_pad = jnp.zeros((L, B, HP), jnp.float32).at[:, :, :H].set(
            c0.astype(jnp.float32))

        args = ([x_pad, h0_pad, c0_pad]
                + list(self._w_packed) + list(self._b_packed)
                + [self._w_head, self._b_head])

        h_out_p, c_out_p, head = pl.pallas_call(
            functools.partial(_decoder_step_kernel,
                              num_layers=L, hp=HP, out_dim=self.output_dim),
            out_shape=(jax.ShapeDtypeStruct((L, B, HP), jnp.float32),
                       jax.ShapeDtypeStruct((L, B, HP), jnp.float32),
                       jax.ShapeDtypeStruct((B, self._p_head), jnp.float32)),
            in_specs=[_VMEM] * len(args),
            out_specs=(_VMEM, _VMEM, _VMEM),
        )(*args)

        h_new = h_out_p[:, :, :H]
        c_new = c_out_p[:, :, :H]
        out_cont = head[:, :self.output_dim]

        out_cat, off = [], self.output_dim
        for nc in self.num_classes:
            out_cat.append(head[:, off:off + nc])
            off += nc

        return out_cont, (h_new, c_new), out_cont, out_cat

    # ------------------------ pure-JAX reference ----------------------------

    def reference(self, inp, hidden):
        B = inp.shape[0]
        x = inp.reshape(B, -1).astype(jnp.float32)
        h0, c0 = hidden
        H = self.hidden_size
        h_new, c_new = [], []
        for layer in range(self.num_layers):
            gates = (x @ self.w_ih[layer].T + h0[layer] @ self.w_hh[layer].T
                     + self.b_ih[layer] + self.b_hh[layer])
            i_g = jax.nn.sigmoid(gates[:, 0 * H:1 * H])
            f_g = jax.nn.sigmoid(gates[:, 1 * H:2 * H])
            g_g = jnp.tanh(gates[:, 2 * H:3 * H])
            o_g = jax.nn.sigmoid(gates[:, 3 * H:4 * H])
            c_l = f_g * c0[layer] + i_g * g_g
            h_l = o_g * jnp.tanh(c_l)
            h_new.append(h_l)
            c_new.append(c_l)
            x = h_l
        dec = jnp.tanh(x)
        out_cont = jnp.maximum(dec @ self.w_lin.T + self.b_lin, 0.0)
        out_cat = [dec @ w.T + b for w, b in zip(self.w_cat, self.b_cat)]
        return out_cont, (jnp.stack(h_new), jnp.stack(c_new)), out_cont, out_cat


# ----------------------------------- main -----------------------------------

if __name__ == "__main__":
    import numpy as np

    batch = 2
    input_dim = 8
    hidden_size = 32
    output_dim = 16
    num_classes = (3, 5)
    num_layers = 2

    model = LSTMAttentionEmbeddingDecoder(input_dim, hidden_size, output_dim,
                                          num_classes, num_layers,
                                          key=jax.random.PRNGKey(0))

    kx, kh, kc = jax.random.split(jax.random.PRNGKey(42), 3)
    inp = jax.random.normal(kx, (batch, input_dim), jnp.float32)
    h0 = jax.random.normal(kh, (num_layers, batch, hidden_size), jnp.float32)
    c0 = jax.random.normal(kc, (num_layers, batch, hidden_size), jnp.float32)

    out_cont, (h_new, c_new), out_cont2, out_cat = model(inp, (h0, c0))
    jax.block_until_ready((out_cont, h_new, c_new, out_cat))

    # Validate against pure-JAX reference.
    r_cont, (r_h, r_c), _, r_cat = model.reference(inp, (h0, c0))
    np.testing.assert_allclose(np.asarray(out_cont), np.asarray(r_cont), atol=1e-5, rtol=1e-5)
    np.testing.assert_allclose(np.asarray(h_new), np.asarray(r_h), atol=1e-5, rtol=1e-5)
    np.testing.assert_allclose(np.asarray(c_new), np.asarray(r_c), atol=1e-5, rtol=1e-5)
    for a, b in zip(out_cat, r_cat):
        np.testing.assert_allclose(np.asarray(a), np.asarray(b), atol=1e-5, rtol=1e-5)

    print("KERNEL_OK")
</pallas_src>

<mosaic_0001>
module attributes {stable_mosaic.version = 11 : i64} {
  func.func @_decoder_step_kernel(%arg0: memref<2x128xf32, #tpu.memory_space<vmem>>, %arg1: memref<2x2x128xf32, #tpu.memory_space<vmem>>, %arg2: memref<2x2x128xf32, #tpu.memory_space<vmem>>, %arg3: memref<256x512xf32, #tpu.memory_space<vmem>>, %arg4: memref<256x512xf32, #tpu.memory_space<vmem>>, %arg5: memref<1x512xf32, #tpu.memory_space<vmem>>, %arg6: memref<1x512xf32, #tpu.memory_space<vmem>>, %arg7: memref<128x128xf32, #tpu.memory_space<vmem>>, %arg8: memref<1x128xf32, #tpu.memory_space<vmem>>, %arg9: memref<2x2x128xf32, #tpu.memory_space<vmem>>, %arg10: memref<2x2x128xf32, #tpu.memory_space<vmem>>, %arg11: memref<2x128xf32, #tpu.memory_space<vmem>>) attributes {dimension_semantics = [], scalar_prefetch = 0 : i64, scratch_operands = 0 : i64, tpu.core_type = #tpu.core_type<tc>} {
    %c0 = arith.constant 0 : index
    %c0_0 = arith.constant 0 : index
    %0 = vector.load %arg0[%c0, %c0_0] : memref<2x128xf32, #tpu.memory_space<vmem>>, vector<2x128xf32>
    %c0_1 = arith.constant 0 : index
    %c0_2 = arith.constant 0 : index
    %c0_3 = arith.constant 0 : index
    %1 = vector.load %arg1[%c0_1, %c0_2, %c0_3] : memref<2x2x128xf32, #tpu.memory_space<vmem>>, vector<1x2x128xf32>
    %2 = vector.shape_cast %1 : vector<1x2x128xf32> to vector<2x128xf32>
    %c0_4 = arith.constant 0 : index
    %c0_5 = arith.constant 0 : index
    %c0_6 = arith.constant 0 : index
    %3 = vector.load %arg2[%c0_4, %c0_5, %c0_6] : memref<2x2x128xf32, #tpu.memory_space<vmem>>, vector<1x2x128xf32>
    %4 = vector.shape_cast %3 : vector<1x2x128xf32> to vector<2x128xf32>
    %5 = tpu.concatenate %0, %2 in 1 : vector<2x128xf32>, vector<2x128xf32> -> vector<2x256xf32>
    %c0_7 = arith.constant 0 : index
    %c0_8 = arith.constant 0 : index
    %6 = vector.load %arg3[%c0_7, %c0_8] : memref<256x512xf32, #tpu.memory_space<vmem>>, vector<256x512xf32>
    %cst = arith.constant dense<0.000000e+00> : vector<2x512xf32>
    %7 = tpu.matmul %5, %6, %cst {dimension_numbers = #tpu.dot_dimension_numbers<[1], [0], [0], [1], [0, 0, 1, 1], [], []>} : vector<2x256xf32>, vector<256x512xf32>, vector<2x512xf32> -> vector<2x512xf32>
    %c0_9 = arith.constant 0 : index
    %c0_10 = arith.constant 0 : index
    %8 = vector.load %arg5[%c0_9, %c0_10] : memref<1x512xf32, #tpu.memory_space<vmem>>, vector<1x512xf32>
    %9 = vector.broadcast %8 : vector<1x512xf32> to vector<2x512xf32>
    %10 = arith.addf %7, %9 : vector<2x512xf32>
    %11 = vector.extract_strided_slice %10 {offsets = [0, 0], sizes = [2, 128], strides = [1, 1]} : vector<2x512xf32> to vector<2x128xf32>
    %12 = arith.negf %11 : vector<2x128xf32>
    %13 = math.exp %12 : vector<2x128xf32>
    %cst_11 = arith.constant 1.000000e+00 : f32
    %14 = vector.broadcast %cst_11 : f32 to vector<2x128xf32>
    %15 = arith.addf %14, %13 : vector<2x128xf32>
    %16 = arith.divf %14, %15 : vector<2x128xf32>
    %17 = vector.extract_strided_slice %10 {offsets = [0, 128], sizes = [2, 128], strides = [1, 1]} : vector<2x512xf32> to vector<2x128xf32>
    %18 = arith.negf %17 : vector<2x128xf32>
    %19 = math.exp %18 : vector<2x128xf32>
    %cst_12 = arith.constant 1.000000e+00 : f32
    %20 = vector.broadcast %cst_12 : f32 to vector<2x128xf32>
    %21 = arith.addf %20, %19 : vector<2x128xf32>
    %22 = arith.divf %20, %21 : vector<2x128xf32>
    %23 = vector.extract_strided_slice %10 {offsets = [0, 256], sizes = [2, 128], strides = [1, 1]} : vector<2x512xf32> to vector<2x128xf32>
    %24 = math.tanh %23 : vector<2x128xf32>
    %25 = vector.extract_strided_slice %10 {offsets = [0, 384], sizes = [2, 128], strides = [1, 1]} : vector<2x512xf32> to vector<2x128xf32>
    %26 = arith.negf %25 : vector<2x128xf32>
    %27 = math.exp %26 : vector<2x128xf32>
    %cst_13 = arith.constant 1.000000e+00 : f32
    %28 = vector.broadcast %cst_13 : f32 to vector<2x128xf32>
    %29 = arith.addf %28, %27 : vector<2x128xf32>
    %30 = arith.divf %28, %29 : vector<2x128xf32>
    %31 = arith.mulf %22, %4 : vector<2x128xf32>
    %32 = arith.mulf %16, %24 : vector<2x128xf32>
    %33 = arith.addf %31, %32 : vector<2x128xf32>
    %34 = math.tanh %33 : vector<2x128xf32>
    %35 = arith.mulf %30, %34 : vector<2x128xf32>
    %c0_14 = arith.constant 0 : index
    %c0_15 = arith.constant 0 : index
    %c0_16 = arith.constant 0 : index
    %36 = vector.load %arg9[%c0_14, %c0_15, %c0_16] : memref<2x2x128xf32, #tpu.memory_space<vmem>>, vector<1x2x128xf32>
    %37 = vector.shape_cast %36 : vector<1x2x128xf32> to vector<2x128xf32>
    %38 = vector.shape_cast %35 : vector<2x128xf32> to vector<1x2x128xf32>
    tpu.vector_store %arg9[%c0_14, %c0_15, %c0_16], %38 {strides = array<i32>} : memref<2x2x128xf32, #tpu.memory_space<vmem>>, vector<1x2x128xf32>,
    %c0_17 = arith.constant 0 : index
    %c0_18 = arith.constant 0 : index
    %c0_19 = arith.constant 0 : index
    %39 = vector.load %arg10[%c0_17, %c0_18, %c0_19] : memref<2x2x128xf32, #tpu.memory_space<vmem>>, vector<1x2x128xf32>
    %40 = vector.shape_cast %39 : vector<1x2x128xf32> to vector<2x128xf32>
    %41 = vector.shape_cast %33 : vector<2x128xf32> to vector<1x2x128xf32>
    tpu.vector_store %arg10[%c0_17, %c0_18, %c0_19], %41 {strides = array<i32>} : memref<2x2x128xf32, #tpu.memory_space<vmem>>, vector<1x2x128xf32>,
    %c1 = arith.constant 1 : index
    %c0_20 = arith.constant 0 : index
    %c0_21 = arith.constant 0 : index
    %42 = vector.load %arg1[%c1, %c0_20, %c0_21] : memref<2x2x128xf32, #tpu.memory_space<vmem>>, vector<1x2x128xf32>
    %43 = vector.shape_cast %42 : vector<1x2x128xf32> to vector<2x128xf32>
    %c1_22 = arith.constant 1 : index
    %c0_23 = arith.constant 0 : index
    %c0_24 = arith.constant 0 : index
    %44 = vector.load %arg2[%c1_22, %c0_23, %c0_24] : memref<2x2x128xf32, #tpu.memory_space<vmem>>, vector<1x2x128xf32>
    %45 = vector.shape_cast %44 : vector<1x2x128xf32> to vector<2x128xf32>
    %46 = tpu.concatenate %35, %43 in 1 : vector<2x128xf32>, vector<2x128xf32> -> vector<2x256xf32>
    %c0_25 = arith.constant 0 : index
    %c0_26 = arith.constant 0 : index
    %47 = vector.load %arg4[%c0_25, %c0_26] : memref<256x512xf32, #tpu.memory_space<vmem>>, vector<256x512xf32>
    %cst_27 = arith.constant dense<0.000000e+00> : vector<2x512xf32>
    %48 = tpu.matmul %46, %47, %cst_27 {dimension_numbers = #tpu.dot_dimension_numbers<[1], [0], [0], [1], [0, 0, 1, 1], [], []>} : vector<2x256xf32>, vector<256x512xf32>, vector<2x512xf32> -> vector<2x512xf32>
    %c0_28 = arith.constant 0 : index
    %c0_29 = arith.constant 0 : index
    %49 = vector.load %arg6[%c0_28, %c0_29] : memref<1x512xf32, #tpu.memory_space<vmem>>, vector<1x512xf32>
    %50 = vector.broadcast %49 : vector<1x512xf32> to vector<2x512xf32>
    %51 = arith.addf %48, %50 : vector<2x512xf32>
    %52 = vector.extract_strided_slice %51 {offsets = [0, 0], sizes = [2, 128], strides = [1, 1]} : vector<2x512xf32> to vector<2x128xf32>
    %53 = arith.negf %52 : vector<2x128xf32>
    %54 = math.exp %53 : vector<2x128xf32>
    %cst_30 = arith.constant 1.000000e+00 : f32
    %55 = vector.broadcast %cst_30 : f32 to vector<2x128xf32>
    %56 = arith.addf %55, %54 : vector<2x128xf32>
    %57 = arith.divf %55, %56 : vector<2x128xf32>
    %58 = vector.extract_strided_slice %51 {offsets = [0, 128], sizes = [2, 128], strides = [1, 1]} : vector<2x512xf32> to vector<2x128xf32>
    %59 = arith.negf %58 : vector<2x128xf32>
    %60 = math.exp %59 : vector<2x128xf32>
    %cst_31 = arith.constant 1.000000e+00 : f32
    %61 = vector.broadcast %cst_31 : f32 to vector<2x128xf32>
    %62 = arith.addf %61, %60 : vector<2x128xf32>
    %63 = arith.divf %61, %62 : vector<2x128xf32>
    %64 = vector.extract_strided_slice %51 {offsets = [0, 256], sizes = [2, 128], strides = [1, 1]} : vector<2x512xf32> to vector<2x128xf32>
    %65 = math.tanh %64 : vector<2x128xf32>
    %66 = vector.extract_strided_slice %51 {offsets = [0, 384], sizes = [2, 128], strides = [1, 1]} : vector<2x512xf32> to vector<2x128xf32>
    %67 = arith.negf %66 : vector<2x128xf32>
    %68 = math.exp %67 : vector<2x128xf32>
    %cst_32 = arith.constant 1.000000e+00 : f32
    %69 = vector.broadcast %cst_32 : f32 to vector<2x128xf32>
    %70 = arith.addf %69, %68 : vector<2x128xf32>
    %71 = arith.divf %69, %70 : vector<2x128xf32>
    %72 = arith.mulf %63, %45 : vector<2x128xf32>
    %73 = arith.mulf %57, %65 : vector<2x128xf32>
    %74 = arith.addf %72, %73 : vector<2x128xf32>
    %75 = math.tanh %74 : vector<2x128xf32>
    %76 = arith.mulf %71, %75 : vector<2x128xf32>
    %c1_33 = arith.constant 1 : index
    %c0_34 = arith.constant 0 : index
    %c0_35 = arith.constant 0 : index
    %77 = vector.load %arg9[%c1_33, %c0_34, %c0_35] : memref<2x2x128xf32, #tpu.memory_space<vmem>>, vector<1x2x128xf32>
    %78 = vector.shape_cast %77 : vector<1x2x128xf32> to vector<2x128xf32>
    %79 = vector.shape_cast %76 : vector<2x128xf32> to vector<1x2x128xf32>
    tpu.vector_store %arg9[%c1_33, %c0_34, %c0_35], %79 {strides = array<i32>} : memref<2x2x128xf32, #tpu.memory_space<vmem>>, vector<1x2x128xf32>,
    %c1_36 = arith.constant 1 : index
    %c0_37 = arith.constant 0 : index
    %c0_38 = arith.constant 0 : index
    %80 = vector.load %arg10[%c1_36, %c0_37, %c0_38] : memref<2x2x128xf32, #tpu.memory_space<vmem>>, vector<1x2x128xf32>
    %81 = vector.shape_cast %80 : vector<1x2x128xf32> to vector<2x128xf32>
    %82 = vector.shape_cast %74 : vector<2x128xf32> to vector<1x2x128xf32>
    tpu.vector_store %arg10[%c1_36, %c0_37, %c0_38], %82 {strides = array<i32>} : memref<2x2x128xf32, #tpu.memory_space<vmem>>, vector<1x2x128xf32>,
    %83 = math.tanh %76 : vector<2x128xf32>
    %c0_39 = arith.constant 0 : index
    %c0_40 = arith.constant 0 : index
    %84 = vector.load %arg7[%c0_39, %c0_40] : memref<128x128xf32, #tpu.memory_space<vmem>>, vector<128x128xf32>
    %cst_41 = arith.constant dense<0.000000e+00> : vector<2x128xf32>
    %85 = tpu.matmul %83, %84, %cst_41 {dimension_numbers = #tpu.dot_dimension_numbers<[1], [0], [0], [1], [0, 0, 1, 1], [], []>} : vector<2x128xf32>, vector<128x128xf32>, vector<2x128xf32> -> vector<2x128xf32>
    %c0_42 = arith.constant 0 : index
    %c0_43 = arith.constant 0 : index
    %86 = vector.load %arg8[%c0_42, %c0_43] : memref<1x128xf32, #tpu.memory_space<vmem>>, vector<1x128xf32>
    %87 = vector.broadcast %86 : vector<1x128xf32> to vector<2x128xf32>
    %88 = arith.addf %85, %87 : vector<2x128xf32>
    %89 = tpu.iota {dimensions = array<i32: 1>} : vector<2x128xi32>
    %c16_i32 = arith.constant 16 : i32
    %90 = vector.broadcast %c16_i32 : i32 to vector<2x128xi32>
    %91 = arith.cmpi slt, %89, %90 : vector<2x128xi32>
    %cst_44 = arith.constant 0.000000e+00 : f32
    %92 = vector.broadcast %cst_44 : f32 to vector<2x128xf32>
    %93 = arith.maximumf %88, %92 : vector<2x128xf32>
    %94 = arith.select %91, %93, %88 : vector<2x128xi1>, vector<2x128xf32>
    %c0_45 = arith.constant 0 : index
    %c0_46 = arith.constant 0 : index
    %95 = vector.load %arg11[%c0_45, %c0_46] : memref<2x128xf32, #tpu.memory_space<vmem>>, vector<2x128xf32>
    tpu.vector_store %arg11[%c0_45, %c0_46], %94 {strides = array<i32>} : memref<2x128xf32, #tpu.memory_space<vmem>>, vector<2x128xf32>,
    return
  }
}

</mosaic_0001>

<llo_original>
// kernel: tpu_custom_call.1
$region0: #{tpu_custom_call.1}
  #allocation0 [shape = 'u32[]', space=smem, size = 0x4, offset = 0x4, fixed_abs, tag = 'smem constant byte address 0x4 - core index']
  #allocation1 [shape = 'u32[144,128]{1,0:T(1,128)}', space=vmem, size = 0x12000, scoped, tag = 'internal scratch']
  %s0 = inlined_call_operand.hbm [shape: f32[2,128], index: 0, kind: input, shape index: {}]
  %s1 = inlined_call_operand.hbm [shape: f32[2,2,128], index: 1, kind: input, shape index: {}]
  %s2 = inlined_call_operand.hbm [shape: f32[2,2,128], index: 2, kind: input, shape index: {}]
  %s3 = inlined_call_operand.hbm [shape: f32[256,512], index: 3, kind: input, shape index: {}]
  %s4 = inlined_call_operand.hbm [shape: f32[256,512], index: 4, kind: input, shape index: {}]
  %s5 = inlined_call_operand.vmem [shape: f32[1,512], index: 5, kind: input, shape index: {}]
  %s6 = inlined_call_operand.vmem [shape: f32[1,512], index: 6, kind: input, shape index: {}]
  %s7 = inlined_call_operand.hbm [shape: f32[128,128], index: 7, kind: input, shape index: {}]
  %s8 = inlined_call_operand.vmem [shape: f32[1,128], index: 8, kind: input, shape index: {}]
  %s9 = inlined_call_operand.hbm [shape: f32[2,2,128], index: 9, kind: output, shape index: {0}]
  %s10 = inlined_call_operand.hbm [shape: f32[2,2,128], index: 10, kind: output, shape index: {1}]
  %s11 = inlined_call_operand.hbm [shape: f32[2,128], index: 11, kind: output, shape index: {2}]
  %12 = xla_tuple %s9, %s10, %s11
  %s13 = sld [smem:[#allocation0]]
  $region86: #{tpu_custom_call.1} parent=0
    _
  %s15 = ssub.s32 1, %s13
  %s16 = scalar_select 0, %s15, %s13
  $region1: #{tpu_custom_call.1} parent=0
    #allocation2 [shape = 'u8[1024]{0}', space=vmem, size = 0x400, scoped, tag = 'input window, operand 0, single buffered']
    #allocation3 [shape = 's32[1]{0}', space=sflag, size = 0x4, scoped, tag = 'scoped memory for tpu_custom_call.1']
    #allocation4 [shape = 's32[1]{0}', space=sflag, size = 0x4, scoped, tag = 'scoped memory for tpu_custom_call.1']
    #allocation5 [shape = 'u8[2048]{0}', space=vmem, size = 0x800, scoped, tag = 'input window, operand 1, single buffered']
    #allocation6 [shape = 's32[1]{0}', space=sflag, size = 0x4, scoped, tag = 'scoped memory for tpu_custom_call.1']
    #allocation7 [shape = 'u8[2048]{0}', space=vmem, size = 0x800, scoped, tag = 'input window, operand 2, single buffered']
    #allocation8 [shape = 'u8[524288]{0}', space=vmem, size = 0x80000, scoped, tag = 'input window, operand 3, single buffered']
    #allocation9 [shape = 's32[1]{0}', space=sflag, size = 0x4, scoped, tag = 'scoped memory for tpu_custom_call.1']
    #allocation10 [shape = 'u8[524288]{0}', space=vmem, size = 0x80000, scoped, tag = 'input window, operand 4, single buffered']
    #allocation11 [shape = 'u8[65536]{0}', space=vmem, size = 0x10000, scoped, tag = 'input window, operand 7, single buffered']
    #allocation12 [shape = 's32[1]{0}', space=sflag, size = 0x4, scoped, tag = 'scoped memory for tpu_custom_call.1']
    #allocation13 [shape = 'u8[2048]{0}', space=vmem, size = 0x800, scoped, tag = 'output window, operand 0, single buffered']
    #allocation14 [shape = 'u8[2048]{0}', space=vmem, size = 0x800, scoped, tag = 'output window, operand 1, single buffered']
    #allocation15 [shape = 's32[1]{0}', space=sflag, size = 0x4, scoped, tag = 'scoped memory for tpu_custom_call.1']
    #allocation16 [shape = 'u8[1024]{0}', space=vmem, size = 0x400, scoped, tag = 'output window, operand 2, single buffered']
    %17 = vsyncpa [#allocation3], 0
    %18 = vsyncpa [#allocation6], 0
    %19 = vsyncpa [#allocation9], 0
    %20 = vsyncpa [#allocation12], 0
    %21 = vsyncpa [#allocation4], 0
    %22 = vsyncpa [#allocation15], 0
    // Predicated region
    $region2: #{tpu_custom_call.1} parent=1 // pred_check
      _
    $region3: #{tpu_custom_call.1} parent=1 // pred_check_branch
      %24 = sbr.rel (0) target = $region5
    $region4: #{tpu_custom_call.1} parent=1 // pred_region
      %s26 = ssub.s32 32, 32
      %27 = vsyncadd [#allocation3], %s26
      %s29 = sshll.u32 [#allocation2], 4
      %s30 = int_to_ptr.vmem [resolvable:$true] %s29
      %32 = dma.hbm_to_vmem [thread:$0]  %s0, 32, %s30, [#allocation3]
    $region5: #{tpu_custom_call.1} parent=1 // pred_fallthru
      _
    // Predicated region
    $region6: #{tpu_custom_call.1} parent=1 // pred_check
      _
    $region7: #{tpu_custom_call.1} parent=1 // pred_check_branch
      %34 = sbr.rel (0) target = $region9
    $region8: #{tpu_custom_call.1} parent=1 // pred_region
      %s36 = ssub.s32 64, 64
      %37 = vsyncadd [#allocation6], %s36
      %s38 = sshll.u32 [#allocation5], 4
      %s39 = int_to_ptr.vmem [resolvable:$true] %s38
      %44 = dma.hbm_to_vmem [thread:$0]  %s1, 64, %s39, [#allocation6], 32, 32, 2
    $region9: #{tpu_custom_call.1} parent=1 // pred_fallthru
      _
    // Predicated region
    $region10: #{tpu_custom_call.1} parent=1 // pred_check
      _
    $region11: #{tpu_custom_call.1} parent=1 // pred_check_branch
      %46 = sbr.rel (0) target = $region13
    $region12: #{tpu_custom_call.1} parent=1 // pred_region
      %s48 = ssub.s32 64, 64
      %49 = vsyncadd [#allocation6], %s48
      %s50 = sshll.u32 [#allocation7], 4
      %s51 = int_to_ptr.vmem [resolvable:$true] %s50
      %56 = dma.hbm_to_vmem [thread:$0]  %s2, 64, %s51, [#allocation6], 32, 32, 2
    $region13: #{tpu_custom_call.1} parent=1 // pred_fallthru
      _
    // Predicated region
    $region14: #{tpu_custom_call.1} parent=1 // pred_check
      _
    $region15: #{tpu_custom_call.1} parent=1 // pred_check_branch
      %58 = sbr.rel (0) target = $region17
    $region16: #{tpu_custom_call.1} parent=1 // pred_region
      %s60 = ssub.s32 16384, 16384
      %61 = vsyncadd [#allocation9], %s60
      %s62 = sshll.u32 [#allocation8], 4
      %s63 = int_to_ptr.vmem [resolvable:$true] %s62
      %68 = dma.hbm_to_vmem [thread:$0]  %s3, 16384, %s63, [#allocation9], 512, 512, 32
    $region17: #{tpu_custom_call.1} parent=1 // pred_fallthru
      _
    // Predicated region
    $region18: #{tpu_custom_call.1} parent=1 // pred_check
      _
    $region19: #{tpu_custom_call.1} parent=1 // pred_check_branch
      %70 = sbr.rel (0) target = $region21
    $region20: #{tpu_custom_call.1} parent=1 // pred_region
      %s72 = ssub.s32 16384, 16384
      %73 = vsyncadd [#allocation9], %s72
      %s74 = sshll.u32 [#allocation10], 4
      %s75 = int_to_ptr.vmem [resolvable:$true] %s74
      %80 = dma.hbm_to_vmem [thread:$0]  %s4, 16384, %s75, [#allocation9], 512, 512, 32
    $region21: #{tpu_custom_call.1} parent=1 // pred_fallthru
      _
    // Predicated region
    $region22: #{tpu_custom_call.1} parent=1 // pred_check
      _
    $region23: #{tpu_custom_call.1} parent=1 // pred_check_branch
      %82 = sbr.rel (0) target = $region25
    $region24: #{tpu_custom_call.1} parent=1 // pred_region
      _
    $region25: #{tpu_custom_call.1} parent=1 // pred_fallthru
      _
    // Predicated region
    $region26: #{tpu_custom_call.1} parent=1 // pred_check
      _
    $region27: #{tpu_custom_call.1} parent=1 // pred_check_branch
      %84 = sbr.rel (0) target = $region29
    $region28: #{tpu_custom_call.1} parent=1 // pred_region
      _
    $region29: #{tpu_custom_call.1} parent=1 // pred_fallthru
      _
    // Predicated region
    $region30: #{tpu_custom_call.1} parent=1 // pred_check
      _
    $region31: #{tpu_custom_call.1} parent=1 // pred_check_branch
      %86 = sbr.rel (0) target = $region33
    $region32: #{tpu_custom_call.1} parent=1 // pred_region
      %s88 = ssub.s32 2048, 2048
      %89 = vsyncadd [#allocation12], %s88
      %s90 = sshll.u32 [#allocation11], 4
      %s91 = int_to_ptr.vmem [resolvable:$true] %s90
      %96 = dma.hbm_to_vmem [thread:$0]  %s7, 2048, %s91, [#allocation12], 128, 128, 8
    $region33: #{tpu_custom_call.1} parent=1 // pred_fallthru
      _
    // Predicated region
    $region34: #{tpu_custom_call.1} parent=1 // pred_check
      _
    $region35: #{tpu_custom_call.1} parent=1 // pred_check_branch
      %98 = sbr.rel (0) target = $region37
    $region36: #{tpu_custom_call.1} parent=1 // pred_region
      _
    $region37: #{tpu_custom_call.1} parent=1 // pred_fallthru
      _
    // Predicated region
    $region38: #{tpu_custom_call.1} parent=1 // pred_check
      _
    $region39: #{tpu_custom_call.1} parent=1 // pred_check_branch
      %100 = sbr.rel (0) target = $region41
    $region40: #{tpu_custom_call.1} parent=1 // pred_region
      %101 = dma.done [#allocation3], 32
    $region41: #{tpu_custom_call.1} parent=1 // pred_fallthru
      _
    // Predicated region
    $region42: #{tpu_custom_call.1} parent=1 // pred_check
      _
    $region43: #{tpu_custom_call.1} parent=1 // pred_check_branch
      %103 = sbr.rel (0) target = $region45
    $region44: #{tpu_custom_call.1} parent=1 // pred_region
      %104 = dma.done [#allocation6], 64
    $region45: #{tpu_custom_call.1} parent=1 // pred_fallthru
      _
    // Predicated region
    $region46: #{tpu_custom_call.1} parent=1 // pred_check
      _
    $region47: #{tpu_custom_call.1} parent=1 // pred_check_branch
      %106 = sbr.rel (0) target = $region49
    $region48: #{tpu_custom_call.1} parent=1 // pred_region
      %107 = dma.done [#allocation6], 64
    $region49: #{tpu_custom_call.1} parent=1 // pred_fallthru
      _
    // Predicated region
    $region50: #{tpu_custom_call.1} parent=1 // pred_check
      _
    $region51: #{tpu_custom_call.1} parent=1 // pred_check_branch
      %109 = sbr.rel (0) target = $region53
    $region52: #{tpu_custom_call.1} parent=1 // pred_region
      %110 = dma.done [#allocation9], 16384
    $region53: #{tpu_custom_call.1} parent=1 // pred_fallthru
      _
    // Predicated region
    $region54: #{tpu_custom_call.1} parent=1 // pred_check
      _
    $region55: #{tpu_custom_call.1} parent=1 // pred_check_branch
      %112 = sbr.rel (0) target = $region57
    $region56: #{tpu_custom_call.1} parent=1 // pred_region
      %113 = dma.done [#allocation9], 16384
    $region57: #{tpu_custom_call.1} parent=1 // pred_fallthru
      _
    // Predicated region
    $region58: #{tpu_custom_call.1} parent=1 // pred_check
      _
    $region59: #{tpu_custom_call.1} parent=1 // pred_check_branch
      %115 = sbr.rel (0) target = $region61
    $region60: #{tpu_custom_call.1} parent=1 // pred_region
      %116 = dma.done [#allocation12], 2048
    $region61: #{tpu_custom_call.1} parent=1 // pred_fallthru
      _
    %v117 = vld [vmem:[#allocation2] sm:$0x3]
    %v118 = vld [vmem:[#allocation5] sm:$0x3]
    %v119 = vld [vmem:[#allocation7] sm:$0x3]
    %v120 = vld [vmem:[#allocation8] sm:$0xff]
    %v121 = vld [vmem:[#allocation8 + $0x8] sm:$0xff]
    %v122 = vld [vmem:[#allocation8 + $0x10] sm:$0xff]
    %v123 = vld [vmem:[#allocation8 + $0x18] sm:$0xff]
    %v124 = vld [vmem:[#allocation8 + $0x20] sm:$0xff]
    %v125 = vld [vmem:[#allocation8 + $0x28] sm:$0xff]
    %v126 = vld [vmem:[#allocation8 + $0x30] sm:$0xff]
    %v127 = vld [vmem:[#allocation8 + $0x38] sm:$0xff]
    %v128 = vld [vmem:[#allocation8 + $0x40] sm:$0xff]
    %v129 = vld [vmem:[#allocation8 + $0x48] sm:$0xff]
    %v130 = vld [vmem:[#allocation8 + $0x50] sm:$0xff]
    %v131 = vld [vmem:[#allocation8 + $0x58] sm:$0xff]
    %v132 = vld [vmem:[#allocation8 + $0x60] sm:$0xff]
    %v133 = vld [vmem:[#allocation8 + $0x68] sm:$0xff]
    %v134 = vld [vmem:[#allocation8 + $0x70] sm:$0xff]
    %v135 = vld [vmem:[#allocation8 + $0x78] sm:$0xff]
    %v136 = vld [vmem:[#allocation8 + $0x80] sm:$0xff]
    %v137 = vld [vmem:[#allocation8 + $0x88] sm:$0xff]
    %v138 = vld [vmem:[#allocation8 + $0x90] sm:$0xff]
    %v139 = vld [vmem:[#allocation8 + $0x98] sm:$0xff]
    %v140 = vld [vmem:[#allocation8 + $0xa0] sm:$0xff]
    %v141 = vld [vmem:[#allocation8 + $0xa8] sm:$0xff]
    %v142 = vld [vmem:[#allocation8 + $0xb0] sm:$0xff]
    %v143 = vld [vmem:[#allocation8 + $0xb8] sm:$0xff]
    %v144 = vld [vmem:[#allocation8 + $0xc0] sm:$0xff]
    %v145 = vld [vmem:[#allocation8 + $0xc8] sm:$0xff]
    %v146 = vld [vmem:[#allocation8 + $0xd0] sm:$0xff]
    %v147 = vld [vmem:[#allocation8 + $0xd8] sm:$0xff]
    %v148 = vld [vmem:[#allocation8 + $0xe0] sm:$0xff]
    %v149 = vld [vmem:[#allocation8 + $0xe8] sm:$0xff]
    %v150 = vld [vmem:[#allocation8 + $0xf0] sm:$0xff]
    %v151 = vld [vmem:[#allocation8 + $0xf8] sm:$0xff]
    %v152 = vld [vmem:[#allocation8 + $0x100] sm:$0xff]
    %v153 = vld [vmem:[#allocation8 + $0x108] sm:$0xff]
    %v154 = vld [vmem:[#allocation8 + $0x110] sm:$0xff]
    %v155 = vld [vmem:[#allocation8 + $0x118] sm:$0xff]
    %v156 = vld [vmem:[#allocation8 + $0x120] sm:$0xff]
    %v157 = vld [vmem:[#allocation8 + $0x128] sm:$0xff]
    %v158 = vld [vmem:[#allocation8 + $0x130] sm:$0xff]
    %v159 = vld [vmem:[#allocation8 + $0x138] sm:$0xff]
    %v160 = vld [vmem:[#allocation8 + $0x140] sm:$0xff]
    %v161 = vld [vmem:[#allocation8 + $0x148] sm:$0xff]
    %v162 = vld [vmem:[#allocation8 + $0x150] sm:$0xff]
    %v163 = vld [vmem:[#allocation8 + $0x158] sm:$0xff]
    %v164 = vld [vmem:[#allocation8 + $0x160] sm:$0xff]
    %v165 = vld [vmem:[#allocation8 + $0x168] sm:$0xff]
    %v166 = vld [vmem:[#allocation8 + $0x170] sm:$0xff]
    %v167 = vld [vmem:[#allocation8 + $0x178] sm:$0xff]
    %v168 = vld [vmem:[#allocation8 + $0x180] sm:$0xff]
    %v169 = vld [vmem:[#allocation8 + $0x188] sm:$0xff]
    %v170 = vld [vmem:[#allocation8 + $0x190] sm:$0xff]
    %v171 = vld [vmem:[#allocation8 + $0x198] sm:$0xff]
    %v172 = vld [vmem:[#allocation8 + $0x1a0] sm:$0xff]
    %v173 = vld [vmem:[#allocation8 + $0x1a8] sm:$0xff]
    %v174 = vld [vmem:[#allocation8 + $0x1b0] sm:$0xff]
    %v175 = vld [vmem:[#allocation8 + $0x1b8] sm:$0xff]
    %v176 = vld [vmem:[#allocation8 + $0x1c0] sm:$0xff]
    %v177 = vld [vmem:[#allocation8 + $0x1c8] sm:$0xff]
    %v178 = vld [vmem:[#allocation8 + $0x1d0] sm:$0xff]
    %v179 = vld [vmem:[#allocation8 + $0x1d8] sm:$0xff]
    %v180 = vld [vmem:[#allocation8 + $0x1e0] sm:$0xff]
    %v181 = vld [vmem:[#allocation8 + $0x1e8] sm:$0xff]
    %v182 = vld [vmem:[#allocation8 + $0x1f0] sm:$0xff]
    %v183 = vld [vmem:[#allocation8 + $0x1f8] sm:$0xff]
    %v184 = vld [vmem:[#allocation8 + $0x200] sm:$0xff]
    %v185 = vld [vmem:[#allocation8 + $0x208] sm:$0xff]
    %v186 = vld [vmem:[#allocation8 + $0x210] sm:$0xff]
    %v187 = vld [vmem:[#allocation8 + $0x218] sm:$0xff]
    %v188 = vld [vmem:[#allocation8 + $0x220] sm:$0xff]
    %v189 = vld [vmem:[#allocation8 + $0x228] sm:$0xff]
    %v190 = vld [vmem:[#allocation8 + $0x230] sm:$0xff]
    %v191 = vld [vmem:[#allocation8 + $0x238] sm:$0xff]
    %v192 = vld [vmem:[#allocation8 + $0x240] sm:$0xff]
    %v193 = vld [vmem:[#allocation8 + $0x248] sm:$0xff]
    %v194 = vld [vmem:[#allocation8 + $0x250] sm:$0xff]
    %v195 = vld [vmem:[#allocation8 + $0x258] sm:$0xff]
    %v196 = vld [vmem:[#allocation8 + $0x260] sm:$0xff]
    %v197 = vld [vmem:[#allocation8 + $0x268] sm:$0xff]
    %v198 = vld [vmem:[#allocation8 + $0x270] sm:$0xff]
    %v199 = vld [vmem:[#allocation8 + $0x278] sm:$0xff]
    %v200 = vld [vmem:[#allocation8 + $0x280] sm:$0xff]
    %v201 = vld [vmem:[#allocation8 + $0x288] sm:$0xff]
    %v202 = vld [vmem:[#allocation8 + $0x290] sm:$0xff]
    %v203 = vld [vmem:[#allocation8 + $0x298] sm:$0xff]
    %v204 = vld [vmem:[#allocation8 + $0x2a0] sm:$0xff]
    %v205 = vld [vmem:[#allocation8 + $0x2a8] sm:$0xff]
    %v206 = vld [vmem:[#allocation8 + $0x2b0] sm:$0xff]
    %v207 = vld [vmem:[#allocation8 + $0x2b8] sm:$0xff]
    %v208 = vld [vmem:[#allocation8 + $0x2c0] sm:$0xff]
    %v209 = vld [vmem:[#allocation8 + $0x2c8] sm:$0xff]
    %v210 = vld [vmem:[#allocation8 + $0x2d0] sm:$0xff]
    %v211 = vld [vmem:[#allocation8 + $0x2d8] sm:$0xff]
    %v212 = vld [vmem:[#allocation8 + $0x2e0] sm:$0xff]
    %v213 = vld [vmem:[#allocation8 + $0x2e8] sm:$0xff]
    %v214 = vld [vmem:[#allocation8 + $0x2f0] sm:$0xff]
    %v215 = vld [vmem:[#allocation8 + $0x2f8] sm:$0xff]
    %v216 = vld [vmem:[#allocation8 + $0x300] sm:$0xff]
    %v217 = vld [vmem:[#allocation8 + $0x308] sm:$0xff]
    %v218 = vld [vmem:[#allocation8 + $0x310] sm:$0xff]
    %v219 = vld [vmem:[#allocation8 + $0x318] sm:$0xff]
    %v220 = vld [vmem:[#allocation8 + $0x320] sm:$0xff]
    %v221 = vld [vmem:[#allocation8 + $0x328] sm:$0xff]
    %v222 = vld [vmem:[#allocation8 + $0x330] sm:$0xff]
    %v223 = vld [vmem:[#allocation8 + $0x338] sm:$0xff]
    %v224 = vld [vmem:[#allocation8 + $0x340] sm:$0xff]
    %v225 = vld [vmem:[#allocation8 + $0x348] sm:$0xff]
    %v226 = vld [vmem:[#allocation8 + $0x350] sm:$0xff]
    %v227 = vld [vmem:[#allocation8 + $0x358] sm:$0xff]
    %v228 = vld [vmem:[#allocation8 + $0x360] sm:$0xff]
    %v229 = vld [vmem:[#allocation8 + $0x368] sm:$0xff]
    %v230 = vld [vmem:[#allocation8 + $0x370] sm:$0xff]
    %v231 = vld [vmem:[#allocation8 + $0x378] sm:$0xff]
    %v232 = vld [vmem:[#allocation8 + $0x380] sm:$0xff]
    %v233 = vld [vmem:[#allocation8 + $0x388] sm:$0xff]
    %v234 = vld [vmem:[#allocation8 + $0x390] sm:$0xff]
    %v235 = vld [vmem:[#allocation8 + $0x398] sm:$0xff]
    %v236 = vld [vmem:[#allocation8 + $0x3a0] sm:$0xff]
    %v237 = vld [vmem:[#allocation8 + $0x3a8] sm:$0xff]
    %v238 = vld [vmem:[#allocation8 + $0x3b0] sm:$0xff]
    %v239 = vld [vmem:[#allocation8 + $0x3b8] sm:$0xff]
    %v240 = vld [vmem:[#allocation8 + $0x3c0] sm:$0xff]
    %v241 = vld [vmem:[#allocation8 + $0x3c8] sm:$0xff]
    %v242 = vld [vmem:[#allocation8 + $0x3d0] sm:$0xff]
    %v243 = vld [vmem:[#allocation8 + $0x3d8] sm:$0xff]
    %v244 = vld [vmem:[#allocation8 + $0x3e0] sm:$0xff]
    %v245 = vld [vmem:[#allocation8 + $0x3e8] sm:$0xff]
    %v246 = vld [vmem:[#allocation8 + $0x3f0] sm:$0xff]
    %v247 = vld [vmem:[#allocation8 + $0x3f8] sm:$0xff]
    %v248 = vld [vmem:[%s5] sm:$0xf]
    %v250 = vlaneseq
    %v251 = vshrl.u32 %v250, 7
    %v252 = vsub.s32 0, %v251
    %v253 = vrot.slane %v248, %v252
    %v254 = vlaneseq
    %v255 = vshrl.u32 %v254, 7
    %v256 = vsub.s32 1, %v255
    %v257 = vrot.slane %v248, %v256
    %v258 = vlaneseq
    %v259 = vshrl.u32 %v258, 7
    %v260 = vsub.s32 2, %v259
    %v261 = vrot.slane %v248, %v260
    %v262 = vlaneseq
    %v263 = vshrl.u32 %v262, 7
    %v264 = vsub.s32 3, %v263
    %v265 = vrot.slane %v248, %v264
    %270 = vmatprep.subr.mxu0 %v181
    %271 = vmatpush1.msra.mxu0 %v180
    %272 = vmatprep.subr.mxu0 %v177
    %273 = vmatpush1.msra.mxu0 %v176
    %274 = vmatprep.subr.mxu0 %v173
    %275 = vmatpush1.msra.mxu0 %v172
    %276 = vmatprep.subr.mxu0 %v169
    %277 = vmatpush1.msra.mxu0 %v168
    %278 = vmatprep.subr.mxu0 %v165
    %279 = vmatpush1.msra.mxu0 %v164
    %280 = vmatprep.subr.mxu0 %v161
    %281 = vmatpush1.msra.mxu0 %v160
    %282 = vmatprep.subr.mxu0 %v157
    %283 = vmatpush1.msra.mxu0 %v156
    %284 = vmatprep.subr.mxu0 %v153
    %285 = vmatpush1.msra.mxu0 %v152
    %286 = vmatprep.subr.mxu0 %v149
    %287 = vmatpush1.msra.mxu0 %v148
    %288 = vmatprep.subr.mxu0 %v145
    %289 = vmatpush1.msra.mxu0 %v144
    %290 = vmatprep.subr.mxu0 %v141
    %291 = vmatpush1.msra.mxu0 %v140
    %292 = vmatprep.subr.mxu0 %v137
    %293 = vmatpush1.msra.mxu0 %v136
    %294 = vmatprep.subr.mxu0 %v133
    %295 = vmatpush1.msra.mxu0 %v132
    %296 = vmatprep.subr.mxu0 %v129
    %297 = vmatpush1.msra.mxu0 %v128
    %298 = vmatprep.subr.mxu0 %v125
    %299 = vmatpush1.msra.mxu0 %v124
    %300 = vmatprep.subr.mxu0 %v121
    %301 = vmatpush1.msra.mxu0 %v120
    %302 = vmatprep.subr.mxu0 %v245
    %303 = vmatpush2.msra.mxu0 %v244
    %304 = vmatprep.subr.mxu0 %v241
    %305 = vmatpush2.msra.mxu0 %v240
    %306 = vmatprep.subr.mxu0 %v237
    %307 = vmatpush2.msra.mxu0 %v236
    %308 = vmatprep.subr.mxu0 %v233
    %309 = vmatpush2.msra.mxu0 %v232
    %310 = vmatprep.subr.mxu0 %v229
    %311 = vmatpush2.msra.mxu0 %v228
    %312 = vmatprep.subr.mxu0 %v225
    %313 = vmatpush2.msra.mxu0 %v224
    %314 = vmatprep.subr.mxu0 %v221
    %315 = vmatpush2.msra.mxu0 %v220
    %316 = vmatprep.subr.mxu0 %v217
    %317 = vmatpush2.msra.mxu0 %v216
    %318 = vmatprep.subr.mxu0 %v213
    %319 = vmatpush2.msra.mxu0 %v212
    %320 = vmatprep.subr.mxu0 %v209
    %321 = vmatpush2.msra.mxu0 %v208
    %322 = vmatprep.subr.mxu0 %v205
    %323 = vmatpush2.msra.mxu0 %v204
    %324 = vmatprep.subr.mxu0 %v201
    %325 = vmatpush2.msra.mxu0 %v200
    %326 = vmatprep.subr.mxu0 %v197
    %327 = vmatpush2.msra.mxu0 %v196
    %328 = vmatprep.subr.mxu0 %v193
    %329 = vmatpush2.msra.mxu0 %v192
    %330 = vmatprep.subr.mxu0 %v189
    %331 = vmatpush2.msra.mxu0 %v188
    %332 = vmatprep.subr.mxu0 %v185
    %333 = vmatpush2.msra.mxu0 %v184
    %334 = vmatprep.mubr.f32.mxu0 %v118
    %335 = vmatmul.mubr.f32.gmra.mxu0 %v117
    %v336 = vpop.f32.mrf.mxu0
    %v337 = vadd.f32 %v253, %v336
    %v338 = vpop.f32.mrf.mxu0
    %v339 = vadd.f32 %v257, %v338
    %340 = vdwg.mxu0
    %341 = vmatprep.subr.mxu0 %v183
    %342 = vmatpush1.msra.mxu0 %v182
    %343 = vmatprep.subr.mxu0 %v179
    %344 = vmatpush1.msra.mxu0 %v178
    %345 = vmatprep.subr.mxu0 %v175
    %346 = vmatpush1.msra.mxu0 %v174
    %347 = vmatprep.subr.mxu0 %v171
    %348 = vmatpush1.msra.mxu0 %v170
    %349 = vmatprep.subr.mxu0 %v167
    %350 = vmatpush1.msra.mxu0 %v166
    %351 = vmatprep.subr.mxu0 %v163
    %352 = vmatpush1.msra.mxu0 %v162
    %353 = vmatprep.subr.mxu0 %v159
    %354 = vmatpush1.msra.mxu0 %v158
    %355 = vmatprep.subr.mxu0 %v155
    %356 = vmatpush1.msra.mxu0 %v154
    %357 = vmatprep.subr.mxu0 %v151
    %358 = vmatpush1.msra.mxu0 %v150
    %359 = vmatprep.subr.mxu0 %v147
    %360 = vmatpush1.msra.mxu0 %v146
    %361 = vmatprep.subr.mxu0 %v143
    %362 = vmatpush1.msra.mxu0 %v142
    %363 = vmatprep.subr.mxu0 %v139
    %364 = vmatpush1.msra.mxu0 %v138
    %365 = vmatprep.subr.mxu0 %v135
    %366 = vmatpush1.msra.mxu0 %v134
    %367 = vmatprep.subr.mxu0 %v131
    %368 = vmatpush1.msra.mxu0 %v130
    %369 = vmatprep.subr.mxu0 %v127
    %370 = vmatpush1.msra.mxu0 %v126
    %371 = vmatprep.subr.mxu0 %v123
    %372 = vmatpush1.msra.mxu0 %v122
    %373 = vmatprep.subr.mxu0 %v247
    %374 = vmatpush2.msra.mxu0 %v246
    %375 = vmatprep.subr.mxu0 %v243
    %376 = vmatpush2.msra.mxu0 %v242
    %377 = vmatprep.subr.mxu0 %v239
    %378 = vmatpush2.msra.mxu0 %v238
    %379 = vmatprep.subr.mxu0 %v235
    %380 = vmatpush2.msra.mxu0 %v234
    %381 = vmatprep.subr.mxu0 %v231
    %382 = vmatpush2.msra.mxu0 %v230
    %383 = vmatprep.subr.mxu0 %v227
    %384 = vmatpush2.msra.mxu0 %v226
    %385 = vmatprep.subr.mxu0 %v223
    %386 = vmatpush2.msra.mxu0 %v222
    %387 = vmatprep.subr.mxu0 %v219
    %388 = vmatpush2.msra.mxu0 %v218
    %389 = vmatprep.subr.mxu0 %v215
    %390 = vmatpush2.msra.mxu0 %v214
    %391 = vmatprep.subr.mxu0 %v211
    %392 = vmatpush2.msra.mxu0 %v210
    %393 = vmatprep.subr.mxu0 %v207
    %394 = vmatpush2.msra.mxu0 %v206
    %395 = vmatprep.subr.mxu0 %v203
    %396 = vmatpush2.msra.mxu0 %v202
    %397 = vmatprep.subr.mxu0 %v199
    %398 = vmatpush2.msra.mxu0 %v198
    %399 = vmatprep.subr.mxu0 %v195
    %400 = vmatpush2.msra.mxu0 %v194
    %401 = vmatprep.subr.mxu0 %v191
    %402 = vmatpush2.msra.mxu0 %v190
    %403 = vmatprep.subr.mxu0 %v187
    %404 = vmatpush2.msra.mxu0 %v186
    %405 = vmatprep.mubr.f32.mxu0 %v118
    %406 = vmatmul.mubr.f32.gmra.mxu0 %v117
    %v407 = vpop.f32.mrf.mxu0
    %v408 = vadd.f32 %v261, %v407
    %v409 = vpop.f32.mrf.mxu0
    %v410 = vadd.f32 %v265, %v409
    %411 = vdwg.mxu0
    %v412 = vxor.u32 %v337, 2147483648
    %v413 = vmul.f32 %v412, 1.442695
    %v414 = vpow.pop %v413
    %v415 = vadd.f32 %v414, 1.0
    %v416 = vrcp.pop %v415
    %v417 = vmul.f32 1.0, %v416
    %v418 = vxor.u32 %v339, 2147483648
    %v419 = vmul.f32 %v418, 1.442695
    %v420 = vpow.pop %v419
    %v421 = vadd.f32 %v420, 1.0
    %v422 = vrcp.pop %v421
    %v423 = vmul.f32 1.0, %v422
    %v424 = vtanh.pop %v408
    %v425 = vxor.u32 %v410, 2147483648
    %v426 = vmul.f32 %v425, 1.442695
    %v427 = vpow.pop %v426
    %v428 = vadd.f32 %v427, 1.0
    %v429 = vrcp.pop %v428
    %v430 = vmul.f32 1.0, %v429
    %v431 = vmul.f32 %v423, %v119
    %v432 = vmul.f32 %v417, %v424
    %v433 = vadd.f32 %v431, %v432
    %v434 = vtanh.pop %v433
    %v435 = vmul.f32 %v430, %v434
    %436 = vst [vmem:[#allocation13] sm:$0x3] %v435
    %437 = vst [vmem:[#allocation14] sm:$0x3] %v433
    %s438 = scalar_lea.vmem [#allocation5], 2
    %v439 = vld [vmem:[%s438] sm:$0x3]
    %s440 = scalar_lea.vmem [#allocation7], 2
    %v441 = vld [vmem:[%s440] sm:$0x3]
    %v442 = vld [vmem:[#allocation10] sm:$0xff]
    %v443 = vld [vmem:[#allocation10 + $0x8] sm:$0xff]
    %v444 = vld [vmem:[#allocation10 + $0x10] sm:$0xff]
    %v445 = vld [vmem:[#allocation10 + $0x18] sm:$0xff]
    %v446 = vld [vmem:[#allocation10 + $0x20] sm:$0xff]
    %v447 = vld [vmem:[#allocation10 + $0x28] sm:$0xff]
    %v448 = vld [vmem:[#allocation10 + $0x30] sm:$0xff]
    %v449 = vld [vmem:[#allocation10 + $0x38] sm:$0xff]
    %v450 = vld [vmem:[#allocation10 + $0x40] sm:$0xff]
    %v451 = vld [vmem:[#allocation10 + $0x48] sm:$0xff]
    %v452 = vld [vmem:[#allocation10 + $0x50] sm:$0xff]
    %v453 = vld [vmem:[#allocation10 + $0x58] sm:$0xff]
    %v454 = vld [vmem:[#allocation10 + $0x60] sm:$0xff]
    %v455 = vld [vmem:[#allocation10 + $0x68] sm:$0xff]
    %v456 = vld [vmem:[#allocation10 + $0x70] sm:$0xff]
    %v457 = vld [vmem:[#allocation10 + $0x78] sm:$0xff]
    %v458 = vld [vmem:[#allocation10 + $0x80] sm:$0xff]
    %v459 = vld [vmem:[#allocation10 + $0x88] sm:$0xff]
    %v460 = vld [vmem:[#allocation10 + $0x90] sm:$0xff]
    %v461 = vld [vmem:[#allocation10 + $0x98] sm:$0xff]
    %v462 = vld [vmem:[#allocation10 + $0xa0] sm:$0xff]
    %v463 = vld [vmem:[#allocation10 + $0xa8] sm:$0xff]
    %v464 = vld [vmem:[#allocation10 + $0xb0] sm:$0xff]
    %v465 = vld [vmem:[#allocation10 + $0xb8] sm:$0xff]
    %v466 = vld [vmem:[#allocation10 + $0xc0] sm:$0xff]
    %v467 = vld [vmem:[#allocation10 + $0xc8] sm:$0xff]
    %v468 = vld [vmem:[#allocation10 + $0xd0] sm:$0xff]
    %v469 = vld [vmem:[#allocation10 + $0xd8] sm:$0xff]
    %v470 = vld [vmem:[#allocation10 + $0xe0] sm:$0xff]
    %v471 = vld [vmem:[#allocation10 + $0xe8] sm:$0xff]
    %v472 = vld [vmem:[#allocation10 + $0xf0] sm:$0xff]
    %v473 = vld [vmem:[#allocation10 + $0xf8] sm:$0xff]
    %v474 = vld [vmem:[#allocation10 + $0x100] sm:$0xff]
    %v475 = vld [vmem:[#allocation10 + $0x108] sm:$0xff]
    %v476 = vld [vmem:[#allocation10 + $0x110] sm:$0xff]
    %v477 = vld [vmem:[#allocation10 + $0x118] sm:$0xff]
    %v478 = vld [vmem:[#allocation10 + $0x120] sm:$0xff]
    %v479 = vld [vmem:[#allocation10 + $0x128] sm:$0xff]
    %v480 = vld [vmem:[#allocation10 + $0x130] sm:$0xff]
    %v481 = vld [vmem:[#allocation10 + $0x138] sm:$0xff]
    %v482 = vld [vmem:[#allocation10 + $0x140] sm:$0xff]
    %v483 = vld [vmem:[#allocation10 + $0x148] sm:$0xff]
    %v484 = vld [vmem:[#allocation10 + $0x150] sm:$0xff]
    %v485 = vld [vmem:[#allocation10 + $0x158] sm:$0xff]
    %v486 = vld [vmem:[#allocation10 + $0x160] sm:$0xff]
    %v487 = vld [vmem:[#allocation10 + $0x168] sm:$0xff]
    %v488 = vld [vmem:[#allocation10 + $0x170] sm:$0xff]
    %v489 = vld [vmem:[#allocation10 + $0x178] sm:$0xff]
    %v490 = vld [vmem:[#allocation10 + $0x180] sm:$0xff]
    %v491 = vld [vmem:[#allocation10 + $0x188] sm:$0xff]
    %v492 = vld [vmem:[#allocation10 + $0x190] sm:$0xff]
    %v493 = vld [vmem:[#allocation10 + $0x198] sm:$0xff]
    %v494 = vld [vmem:[#allocation10 + $0x1a0] sm:$0xff]
    %v495 = vld [vmem:[#allocation10 + $0x1a8] sm:$0xff]
    %v496 = vld [vmem:[#allocation10 + $0x1b0] sm:$0xff]
    %v497 = vld [vmem:[#allocation10 + $0x1b8] sm:$0xff]
    %v498 = vld [vmem:[#allocation10 + $0x1c0] sm:$0xff]
    %v499 = vld [vmem:[#allocation10 + $0x1c8] sm:$0xff]
    %v500 = vld [vmem:[#allocation10 + $0x1d0] sm:$0xff]
    %v501 = vld [vmem:[#allocation10 + $0x1d8] sm:$0xff]
    %v502 = vld [vmem:[#allocation10 + $0x1e0] sm:$0xff]
    %v503 = vld [vmem:[#allocation10 + $0x1e8] sm:$0xff]
    %v504 = vld [vmem:[#allocation10 + $0x1f0] sm:$0xff]
    %v505 = vld [vmem:[#allocation10 + $0x1f8] sm:$0xff]
    %v506 = vld [vmem:[#allocation10 + $0x200] sm:$0xff]
    %v507 = vld [vmem:[#allocation10 + $0x208] sm:$0xff]
    %v508 = vld [vmem:[#allocation10 + $0x210] sm:$0xff]
    %v509 = vld [vmem:[#allocation10 + $0x218] sm:$0xff]
    %v510 = vld [vmem:[#allocation10 + $0x220] sm:$0xff]
    %v511 = vld [vmem:[#allocation10 + $0x228] sm:$0xff]
    %v512 = vld [vmem:[#allocation10 + $0x230] sm:$0xff]
    %v513 = vld [vmem:[#allocation10 + $0x238] sm:$0xff]
    %v514 = vld [vmem:[#allocation10 + $0x240] sm:$0xff]
    %v515 = vld [vmem:[#allocation10 + $0x248] sm:$0xff]
    %v516 = vld [vmem:[#allocation10 + $0x250] sm:$0xff]
    %v517 = vld [vmem:[#allocation10 + $0x258] sm:$0xff]
    %v518 = vld [vmem:[#allocation10 + $0x260] sm:$0xff]
    %v519 = vld [vmem:[#allocation10 + $0x268] sm:$0xff]
    %v520 = vld [vmem:[#allocation10 + $0x270] sm:$0xff]
    %v521 = vld [vmem:[#allocation10 + $0x278] sm:$0xff]
    %v522 = vld [vmem:[#allocation10 + $0x280] sm:$0xff]
    %v523 = vld [vmem:[#allocation10 + $0x288] sm:$0xff]
    %v524 = vld [vmem:[#allocation10 + $0x290] sm:$0xff]
    %v525 = vld [vmem:[#allocation10 + $0x298] sm:$0xff]
    %v526 = vld [vmem:[#allocation10 + $0x2a0] sm:$0xff]
    %v527 = vld [vmem:[#allocation10 + $0x2a8] sm:$0xff]
    %v528 = vld [vmem:[#allocation10 + $0x2b0] sm:$0xff]
    %v529 = vld [vmem:[#allocation10 + $0x2b8] sm:$0xff]
    %v530 = vld [vmem:[#allocation10 + $0x2c0] sm:$0xff]
    %v531 = vld [vmem:[#allocation10 + $0x2c8] sm:$0xff]
    %v532 = vld [vmem:[#allocation10 + $0x2d0] sm:$0xff]
    %v533 = vld [vmem:[#allocation10 + $0x2d8] sm:$0xff]
    %v534 = vld [vmem:[#allocation10 + $0x2e0] sm:$0xff]
    %v535 = vld [vmem:[#allocation10 + $0x2e8] sm:$0xff]
    %v536 = vld [vmem:[#allocation10 + $0x2f0] sm:$0xff]
    %v537 = vld [vmem:[#allocation10 + $0x2f8] sm:$0xff]
    %v538 = vld [vmem:[#allocation10 + $0x300] sm:$0xff]
    %v539 = vld [vmem:[#allocation10 + $0x308] sm:$0xff]
    %v540 = vld [vmem:[#allocation10 + $0x310] sm:$0xff]
    %v541 = vld [vmem:[#allocation10 + $0x318] sm:$0xff]
    %v542 = vld [vmem:[#allocation10 + $0x320] sm:$0xff]
    %v543 = vld [vmem:[#allocation10 + $0x328] sm:$0xff]
    %v544 = vld [vmem:[#allocation10 + $0x330] sm:$0xff]
    %v545 = vld [vmem:[#allocation10 + $0x338] sm:$0xff]
    %v546 = vld [vmem:[#allocation10 + $0x340] sm:$0xff]
    %v547 = vld [vmem:[#allocation10 + $0x348] sm:$0xff]
    %v548 = vld [vmem:[#allocation10 + $0x350] sm:$0xff]
    %v549 = vld [vmem:[#allocation10 + $0x358] sm:$0xff]
    %v550 = vld [vmem:[#allocation10 + $0x360] sm:$0xff]
    %v551 = vld [vmem:[#allocation10 + $0x368] sm:$0xff]
    %v552 = vld [vmem:[#allocation10 + $0x370] sm:$0xff]
    %v553 = vld [vmem:[#allocation10 + $0x378] sm:$0xff]
    %v554 = vld [vmem:[#allocation10 + $0x380] sm:$0xff]
    %v555 = vld [vmem:[#allocation10 + $0x388] sm:$0xff]
    %v556 = vld [vmem:[#allocation10 + $0x390] sm:$0xff]
    %v557 = vld [vmem:[#allocation10 + $0x398] sm:$0xff]
    %v558 = vld [vmem:[#allocation10 + $0x3a0] sm:$0xff]
    %v559 = vld [vmem:[#allocation10 + $0x3a8] sm:$0xff]
    %v560 = vld [vmem:[#allocation10 + $0x3b0] sm:$0xff]
    %v561 = vld [vmem:[#allocation10 + $0x3b8] sm:$0xff]
    %v562 = vld [vmem:[#allocation10 + $0x3c0] sm:$0xff]
    %v563 = vld [vmem:[#allocation10 + $0x3c8] sm:$0xff]
    %v564 = vld [vmem:[#allocation10 + $0x3d0] sm:$0xff]
    %v565 = vld [vmem:[#allocation10 + $0x3d8] sm:$0xff]
    %v566 = vld [vmem:[#allocation10 + $0x3e0] sm:$0xff]
    %v567 = vld [vmem:[#allocation10 + $0x3e8] sm:$0xff]
    %v568 = vld [vmem:[#allocation10 + $0x3f0] sm:$0xff]
    %v569 = vld [vmem:[#allocation10 + $0x3f8] sm:$0xff]
    %v570 = vld [vmem:[%s6] sm:$0xf]
    %v572 = vlaneseq
    %v573 = vshrl.u32 %v572, 7
    %v574 = vsub.s32 0, %v573
    %v575 = vrot.slane %v570, %v574
    %v576 = vlaneseq
    %v577 = vshrl.u32 %v576, 7
    %v578 = vsub.s32 1, %v577
    %v579 = vrot.slane %v570, %v578
    %v580 = vlaneseq
    %v581 = vshrl.u32 %v580, 7
    %v582 = vsub.s32 2, %v581
    %v583 = vrot.slane %v570, %v582
    %v584 = vlaneseq
    %v585 = vshrl.u32 %v584, 7
    %v586 = vsub.s32 3, %v585
    %v587 = vrot.slane %v570, %v586
    %592 = vmatprep.subr.mxu0 %v503
    %593 = vmatpush1.msra.mxu0 %v502
    %594 = vmatprep.subr.mxu0 %v499
    %595 = vmatpush1.msra.mxu0 %v498
    %596 = vmatprep.subr.mxu0 %v495
    %597 = vmatpush1.msra.mxu0 %v494
    %598 = vmatprep.subr.mxu0 %v491
    %599 = vmatpush1.msra.mxu0 %v490
    %600 = vmatprep.subr.mxu0 %v487
    %601 = vmatpush1.msra.mxu0 %v486
    %602 = vmatprep.subr.mxu0 %v483
    %603 = vmatpush1.msra.mxu0 %v482
    %604 = vmatprep.subr.mxu0 %v479
    %605 = vmatpush1.msra.mxu0 %v478
    %606 = vmatprep.subr.mxu0 %v475
    %607 = vmatpush1.msra.mxu0 %v474
    %608 = vmatprep.subr.mxu0 %v471
    %609 = vmatpush1.msra.mxu0 %v470
    %610 = vmatprep.subr.mxu0 %v467
    %611 = vmatpush1.msra.mxu0 %v466
    %612 = vmatprep.subr.mxu0 %v463
    %613 = vmatpush1.msra.mxu0 %v462
    %614 = vmatprep.subr.mxu0 %v459
    %615 = vmatpush1.msra.mxu0 %v458
    %616 = vmatprep.subr.mxu0 %v455
    %617 = vmatpush1.msra.mxu0 %v454
    %618 = vmatprep.subr.mxu0 %v451
    %619 = vmatpush1.msra.mxu0 %v450
    %620 = vmatprep.subr.mxu0 %v447
    %621 = vmatpush1.msra.mxu0 %v446
    %622 = vmatprep.subr.mxu0 %v443
    %623 = vmatpush1.msra.mxu0 %v442
    %624 = vmatprep.subr.mxu0 %v567
    %625 = vmatpush2.msra.mxu0 %v566
    %626 = vmatprep.subr.mxu0 %v563
    %627 = vmatpush2.msra.mxu0 %v562
    %628 = vmatprep.subr.mxu0 %v559
    %629 = vmatpush2.msra.mxu0 %v558
    %630 = vmatprep.subr.mxu0 %v555
    %631 = vmatpush2.msra.mxu0 %v554
    %632 = vmatprep.subr.mxu0 %v551
    %633 = vmatpush2.msra.mxu0 %v550
    %634 = vmatprep.subr.mxu0 %v547
    %635 = vmatpush2.msra.mxu0 %v546
    %636 = vmatprep.subr.mxu0 %v543
    %637 = vmatpush2.msra.mxu0 %v542
    %638 = vmatprep.subr.mxu0 %v539
    %639 = vmatpush2.msra.mxu0 %v538
    %640 = vmatprep.subr.mxu0 %v535
    %641 = vmatpush2.msra.mxu0 %v534
    %642 = vmatprep.subr.mxu0 %v531
    %643 = vmatpush2.msra.mxu0 %v530
    %644 = vmatprep.subr.mxu0 %v527
    %645 = vmatpush2.msra.mxu0 %v526
    %646 = vmatprep.subr.mxu0 %v523
    %647 = vmatpush2.msra.mxu0 %v522
    %648 = vmatprep.subr.mxu0 %v519
    %649 = vmatpush2.msra.mxu0 %v518
    %650 = vmatprep.subr.mxu0 %v515
    %651 = vmatpush2.msra.mxu0 %v514
    %652 = vmatprep.subr.mxu0 %v511
    %653 = vmatpush2.msra.mxu0 %v510
    %654 = vmatprep.subr.mxu0 %v507
    %655 = vmatpush2.msra.mxu0 %v506
    %656 = vmatprep.mubr.f32.mxu0 %v439
    %657 = vmatmul.mubr.f32.gmra.mxu0 %v435
    %v658 = vpop.f32.mrf.mxu0
    %v659 = vadd.f32 %v575, %v658
    %v660 = vpop.f32.mrf.mxu0
    %v661 = vadd.f32 %v579, %v660
    %662 = vdwg.mxu0
    %663 = vmatprep.subr.mxu0 %v505
    %664 = vmatpush1.msra.mxu0 %v504
    %665 = vmatprep.subr.mxu0 %v501
    %666 = vmatpush1.msra.mxu0 %v500
    %667 = vmatprep.subr.mxu0 %v497
    %668 = vmatpush1.msra.mxu0 %v496
    %669 = vmatprep.subr.mxu0 %v493
    %670 = vmatpush1.msra.mxu0 %v492
    %671 = vmatprep.subr.mxu0 %v489
    %672 = vmatpush1.msra.mxu0 %v488
    %673 = vmatprep.subr.mxu0 %v485
    %674 = vmatpush1.msra.mxu0 %v484
    %675 = vmatprep.subr.mxu0 %v481
    %676 = vmatpush1.msra.mxu0 %v480
    %677 = vmatprep.subr.mxu0 %v477
    %678 = vmatpush1.msra.mxu0 %v476
    %679 = vmatprep.subr.mxu0 %v473
    %680 = vmatpush1.msra.mxu0 %v472
    %681 = vmatprep.subr.mxu0 %v469
    %682 = vmatpush1.msra.mxu0 %v468
    %683 = vmatprep.subr.mxu0 %v465
    %684 = vmatpush1.msra.mxu0 %v464
    %685 = vmatprep.subr.mxu0 %v461
    %686 = vmatpush1.msra.mxu0 %v460
    %687 = vmatprep.subr.mxu0 %v457
    %688 = vmatpush1.msra.mxu0 %v456
    %689 = vmatprep.subr.mxu0 %v453
    %690 = vmatpush1.msra.mxu0 %v452
    %691 = vmatprep.subr.mxu0 %v449
    %692 = vmatpush1.msra.mxu0 %v448
    %693 = vmatprep.subr.mxu0 %v445
    %694 = vmatpush1.msra.mxu0 %v444
    %695 = vmatprep.subr.mxu0 %v569
    %696 = vmatpush2.msra.mxu0 %v568
    %697 = vmatprep.subr.mxu0 %v565
    %698 = vmatpush2.msra.mxu0 %v564
    %699 = vmatprep.subr.mxu0 %v561
    %700 = vmatpush2.msra.mxu0 %v560
    %701 = vmatprep.subr.mxu0 %v557
    %702 = vmatpush2.msra.mxu0 %v556
    %703 = vmatprep.subr.mxu0 %v553
    %704 = vmatpush2.msra.mxu0 %v552
    %705 = vmatprep.subr.mxu0 %v549
    %706 = vmatpush2.msra.mxu0 %v548
    %707 = vmatprep.subr.mxu0 %v545
    %708 = vmatpush2.msra.mxu0 %v544
    %709 = vmatprep.subr.mxu0 %v541
    %710 = vmatpush2.msra.mxu0 %v540
    %711 = vmatprep.subr.mxu0 %v537
    %712 = vmatpush2.msra.mxu0 %v536
    %713 = vmatprep.subr.mxu0 %v533
    %714 = vmatpush2.msra.mxu0 %v532
    %715 = vmatprep.subr.mxu0 %v529
    %716 = vmatpush2.msra.mxu0 %v528
    %717 = vmatprep.subr.mxu0 %v525
    %718 = vmatpush2.msra.mxu0 %v524
    %719 = vmatprep.subr.mxu0 %v521
    %720 = vmatpush2.msra.mxu0 %v520
    %721 = vmatprep.subr.mxu0 %v517
    %722 = vmatpush2.msra.mxu0 %v516
    %723 = vmatprep.subr.mxu0 %v513
    %724 = vmatpush2.msra.mxu0 %v512
    %725 = vmatprep.subr.mxu0 %v509
    %726 = vmatpush2.msra.mxu0 %v508
    %727 = vmatprep.mubr.f32.mxu0 %v439
    %728 = vmatmul.mubr.f32.gmra.mxu0 %v435
    %v729 = vpop.f32.mrf.mxu0
    %v730 = vadd.f32 %v583, %v729
    %v731 = vpop.f32.mrf.mxu0
    %v732 = vadd.f32 %v587, %v731
    %733 = vdwg.mxu0
    %v734 = vxor.u32 %v659, 2147483648
    %v735 = vmul.f32 %v734, 1.442695
    %v736 = vpow.pop %v735
    %v737 = vadd.f32 %v736, 1.0
    %v738 = vrcp.pop %v737
    %v739 = vmul.f32 1.0, %v738
    %v740 = vxor.u32 %v661, 2147483648
    %v741 = vmul.f32 %v740, 1.442695
    %v742 = vpow.pop %v741
    %v743 = vadd.f32 %v742, 1.0
    %v744 = vrcp.pop %v743
    %v745 = vmul.f32 1.0, %v744
    %v746 = vtanh.pop %v730
    %v747 = vxor.u32 %v732, 2147483648
    %v748 = vmul.f32 %v747, 1.442695
    %v749 = vpow.pop %v748
    %v750 = vadd.f32 %v749, 1.0
    %v751 = vrcp.pop %v750
    %v752 = vmul.f32 1.0, %v751
    %v753 = vmul.f32 %v745, %v441
    %v754 = vmul.f32 %v739, %v746
    %v755 = vadd.f32 %v753, %v754
    %v756 = vtanh.pop %v755
    %v757 = vmul.f32 %v752, %v756
    %s758 = scalar_lea.vmem [#allocation13], 2
    %759 = vst [vmem:[%s758] sm:$0x3] %v757
    %s760 = scalar_lea.vmem [#allocation14], 2
    %761 = vst [vmem:[%s760] sm:$0x3] %v755
    %v762 = vtanh.pop %v757
    %v763 = vld [vmem:[#allocation11] sm:$0xff]
    %v764 = vld [vmem:[#allocation11 + $0x8] sm:$0xff]
    %v765 = vld [vmem:[#allocation11 + $0x10] sm:$0xff]
    %v766 = vld [vmem:[#allocation11 + $0x18] sm:$0xff]
    %v767 = vld [vmem:[#allocation11 + $0x20] sm:$0xff]
    %v768 = vld [vmem:[#allocation11 + $0x28] sm:$0xff]
    %v769 = vld [vmem:[#allocation11 + $0x30] sm:$0xff]
    %v770 = vld [vmem:[#allocation11 + $0x38] sm:$0xff]
    %v771 = vld [vmem:[#allocation11 + $0x40] sm:$0xff]
    %v772 = vld [vmem:[#allocation11 + $0x48] sm:$0xff]
    %v773 = vld [vmem:[#allocation11 + $0x50] sm:$0xff]
    %v774 = vld [vmem:[#allocation11 + $0x58] sm:$0xff]
    %v775 = vld [vmem:[#allocation11 + $0x60] sm:$0xff]
    %v776 = vld [vmem:[#allocation11 + $0x68] sm:$0xff]
    %v777 = vld [vmem:[#allocation11 + $0x70] sm:$0xff]
    %v778 = vld [vmem:[#allocation11 + $0x78] sm:$0xff]
    %v779 = vld [vmem:[%s8] sm:$0x1]
    %v781 = vlaneseq
    %v782 = vshrl.u32 %v781, 7
    %v783 = vsub.s32 0, %v782
    %v784 = vrot.slane %v779, %v783
    %786 = vmatprep.subr.mxu0 0.0
    %787 = vmatpush1.msra.mxu0 %v778
    %788 = vmatprep.subr.mxu0 0.0
    %789 = vmatpush1.msra.mxu0 %v777
    %790 = vmatprep.subr.mxu0 0.0
    %791 = vmatpush1.msra.mxu0 %v776
    %792 = vmatprep.subr.mxu0 0.0
    %793 = vmatpush1.msra.mxu0 %v775
    %794 = vmatprep.subr.mxu0 0.0
    %795 = vmatpush1.msra.mxu0 %v774
    %796 = vmatprep.subr.mxu0 0.0
    %797 = vmatpush1.msra.mxu0 %v773
    %798 = vmatprep.subr.mxu0 0.0
    %799 = vmatpush1.msra.mxu0 %v772
    %800 = vmatprep.subr.mxu0 0.0
    %801 = vmatpush1.msra.mxu0 %v771
    %802 = vmatprep.subr.mxu0 0.0
    %803 = vmatpush1.msra.mxu0 %v770
    %804 = vmatprep.subr.mxu0 0.0
    %805 = vmatpush1.msra.mxu0 %v769
    %806 = vmatprep.subr.mxu0 0.0
    %807 = vmatpush1.msra.mxu0 %v768
    %808 = vmatprep.subr.mxu0 0.0
    %809 = vmatpush1.msra.mxu0 %v767
    %810 = vmatprep.subr.mxu0 0.0
    %811 = vmatpush1.msra.mxu0 %v766
    %812 = vmatprep.subr.mxu0 0.0
    %813 = vmatpush1.msra.mxu0 %v765
    %814 = vmatprep.subr.mxu0 0.0
    %815 = vmatpush1.msra.mxu0 %v764
    %816 = vmatprep.subr.mxu0 0.0
    %817 = vmatpush1.msra.mxu0 %v763
    %818 = vmatprep.subr.mxu0 0.0
    %819 = vmatpush2.msra.mxu0 0.0
    %820 = vmatprep.subr.mxu0 0.0
    %821 = vmatpush2.msra.mxu0 0.0
    %822 = vmatprep.subr.mxu0 0.0
    %823 = vmatpush2.msra.mxu0 0.0
    %824 = vmatprep.subr.mxu0 0.0
    %825 = vmatpush2.msra.mxu0 0.0
    %826 = vmatprep.subr.mxu0 0.0
    %827 = vmatpush2.msra.mxu0 0.0
    %828 = vmatprep.subr.mxu0 0.0
    %829 = vmatpush2.msra.mxu0 0.0
    %830 = vmatprep.subr.mxu0 0.0
    %831 = vmatpush2.msra.mxu0 0.0
    %832 = vmatprep.subr.mxu0 0.0
    %833 = vmatpush2.msra.mxu0 0.0
    %834 = vmatprep.subr.mxu0 0.0
    %835 = vmatpush2.msra.mxu0 0.0
    %836 = vmatprep.subr.mxu0 0.0
    %837 = vmatpush2.msra.mxu0 0.0
    %838 = vmatprep.subr.mxu0 0.0
    %839 = vmatpush2.msra.mxu0 0.0
    %840 = vmatprep.subr.mxu0 0.0
    %841 = vmatpush2.msra.mxu0 0.0
    %842 = vmatprep.subr.mxu0 0.0
    %843 = vmatpush2.msra.mxu0 0.0
    %844 = vmatprep.subr.mxu0 0.0
    %845 = vmatpush2.msra.mxu0 0.0
    %846 = vmatprep.subr.mxu0 0.0
    %847 = vmatpush2.msra.mxu0 0.0
    %848 = vmatprep.subr.mxu0 0.0
    %849 = vmatpush2.msra.mxu0 0.0
    %850 = vmatprep.mubr.f32.mxu0 0.0
    %851 = vmatmul.mubr.f32.gmra.mxu0 %v762
    %v852 = vpop.f32.mrf.mxu0
    %v853 = vadd.f32 %v784, %v852
    %v854 = vpop.f32.mrf.mxu0
    %855 = vdwg.mxu0
    %v856 = vlaneseq
    %v857 = vand.u32 %v856, 127
    %vm858 = vcmp.lt.s32.totalorder %v857, 16
    %v859 = vmax.f32 %v853, 0.0
    %v860 = vsel %vm858, %v859, %v853
    %861 = vst [vmem:[#allocation16] sm:$0x3] %v860
    // Predicated region
    $region62: #{tpu_custom_call.1} parent=1 // pred_check
      _
    $region63: #{tpu_custom_call.1} parent=1 // pred_check_branch
      %863 = sbr.rel (0) target = $region65
    $region64: #{tpu_custom_call.1} parent=1 // pred_region
      %s865 = ssub.s32 64, 64
      %866 = vsyncadd [#allocation4], %s865
      %s867 = sshll.u32 [#allocation13], 4
      %s868 = int_to_ptr.vmem [resolvable:$true] %s867
      %873 = dma.vmem_to_hbm [thread:$0]  %s868, 64, %s9, [#allocation4], 32, 32, 2
    $region65: #{tpu_custom_call.1} parent=1 // pred_fallthru
      _
    // Predicated region
    $region66: #{tpu_custom_call.1} parent=1 // pred_check
      _
    $region67: #{tpu_custom_call.1} parent=1 // pred_check_branch
      %875 = sbr.rel (0) target = $region69
    $region68: #{tpu_custom_call.1} parent=1 // pred_region
      %s877 = ssub.s32 64, 64
      %878 = vsyncadd [#allocation15], %s877
      %s879 = sshll.u32 [#allocation14], 4
      %s880 = int_to_ptr.vmem [resolvable:$true] %s879
      %885 = dma.vmem_to_hbm [thread:$0]  %s880, 64, %s10, [#allocation15], 32, 32, 2
    $region69: #{tpu_custom_call.1} parent=1 // pred_fallthru
      _
    // Predicated region
    $region70: #{tpu_custom_call.1} parent=1 // pred_check
      _
    $region71: #{tpu_custom_call.1} parent=1 // pred_check_branch
      %887 = sbr.rel (0) target = $region73
    $region72: #{tpu_custom_call.1} parent=1 // pred_region
      %s889 = ssub.s32 32, 32
      %890 = vsyncadd [#allocation15], %s889
      %s892 = sshll.u32 [#allocation16], 4
      %s893 = int_to_ptr.vmem [resolvable:$true] %s892
      %895 = dma.vmem_to_hbm [thread:$0]  %s893, 32, %s11, [#allocation15]
    $region73: #{tpu_custom_call.1} parent=1 // pred_fallthru
      _
    // Predicated region
    $region74: #{tpu_custom_call.1} parent=1 // pred_check
      _
    $region75: #{tpu_custom_call.1} parent=1 // pred_check_branch
      %897 = sbr.rel (0) target = $region77
    $region76: #{tpu_custom_call.1} parent=1 // pred_region
      %898 = dma.done [#allocation4], 64
    $region77: #{tpu_custom_call.1} parent=1 // pred_fallthru
      _
    // Predicated region
    $region78: #{tpu_custom_call.1} parent=1 // pred_check
      _
    $region79: #{tpu_custom_call.1} parent=1 // pred_check_branch
      %900 = sbr.rel (0) target = $region81
    $region80: #{tpu_custom_call.1} parent=1 // pred_region
      %901 = dma.done [#allocation15], 64
    $region81: #{tpu_custom_call.1} parent=1 // pred_fallthru
      _
    // Predicated region
    $region82: #{tpu_custom_call.1} parent=1 // pred_check
      _
    $region83: #{tpu_custom_call.1} parent=1 // pred_check_branch
      %903 = sbr.rel (0) target = $region85
    $region84: #{tpu_custom_call.1} parent=1 // pred_region
      %904 = dma.done [#allocation15], 32
    $region85: #{tpu_custom_call.1} parent=1 // pred_fallthru
      _
    %905 = vsyncpa [#allocation3], 1
    %906 = vsyncpa [#allocation6], 1
    %907 = vsyncpa [#allocation9], 1
    %908 = vsyncpa [#allocation12], 1
    %909 = vsyncpa [#allocation4], 1
    %910 = vsyncpa [#allocation15], 1

</llo_original>
